<compile_context>
chip_gen: v5e
topology: v5e:2x2
jax: 0.10.0
libtpu: 0.0.40
codegen_flags: <defaults>
</compile_context>

<pallas_src>
import functools

import jax
import jax.numpy as jnp
from jax.experimental import pallas as pl
from jax.experimental.pallas import tpu as pltpu

_LANE = 128


def _round_up(n: int, m: int) -> int:
    return ((n + m - 1) // m) * m


def _make_mlp_kernel(proba: bool, n_classes: int, c_padded: int):
    def mlp_kernel(x_ref, w0_ref, b0_ref, w1_ref, b1_ref, o_ref):
        x = x_ref[...]                                   # [BM, 2]
        w0 = w0_ref[...]                                 # [2, Fp]

        # dense0 (K=2) as two VPU broadcast-multiply-adds + ReLU.
        h = x[:, 0:1] * w0[0:1, :] + x[:, 1:2] * w0[1:2, :] + b0_ref[...]
        h = jnp.maximum(h, 0.0)                          # [BM, Fp]

        # Dropout(0.5): eval-mode identity (matches model.eval()).
        # TODO(synk): training-mode stochastic dropout would use pltpu.prng_seed +
        #             pltpu.prng_random_bits; omitted since inference is deterministic.

        # dense1 on the MXU: [BM, Fp] x [Fp, Cp], f32 accumulate.
        y = jnp.dot(h, w1_ref[...], preferred_element_type=jnp.float32)
        y = y + b1_ref[...]                              # [BM, Cp]

        if proba:
            # Softmax over dim=1 (classes). Padded class columns are masked to -inf
            # so exp() -> 0 and they don't contribute to the normalization.
            col = jax.lax.broadcasted_iota(jnp.int32, (1, c_padded), 1)
            y = jnp.where(col < n_classes, y, -jnp.inf)
            m = jnp.max(y, axis=1, keepdims=True)
            e = jnp.exp(y - m)
            # Exact reciprocal kept on purpose: approx=True (EUP vrcp) loses a few
            # ULPs vs jax.nn.softmax and this path is nowhere near the bottleneck.
            y = e * pl.reciprocal(jnp.sum(e, axis=1, keepdims=True), approx=False)

        o_ref[...] = y.astype(o_ref.dtype)

    return mlp_kernel


@functools.partial(jax.jit, static_argnames=("proba", "block_m"))
def toy_module_2d_forward(x, w0, b0, w1, b1, *, proba=False, block_m=1024):
    """x: [B, 2] f32; w0: [2, F]; b0: [1, F]; w1: [F, C]; b1: [1, C] -> [B, C]."""
    B, K = x.shape
    assert K == 2, "ToyModule2D expects 2 input features"
    F = w0.shape[1]
    C = w1.shape[1]

    # Lane-dense padding of the feature/class axes (zero-pad weights & biases).
    Fp = _round_up(F, _LANE)
    Cp = _round_up(C, _LANE)
    w0p = jnp.pad(w0.astype(jnp.float32), ((0, 0), (0, Fp - F)))
    b0p = jnp.pad(b0.reshape(1, F).astype(jnp.float32), ((0, 0), (0, Fp - F)))
    w1p = jnp.pad(w1.astype(jnp.float32), ((0, Fp - F), (0, Cp - C)))
    b1p = jnp.pad(b1.reshape(1, C).astype(jnp.float32), ((0, 0), (0, Cp - C)))

    # Batch tiling: BM multiple of 8, capped at block_m. Tiles stay tiny relative
    # to VMEM on v5e/v6e/v7x alike even at BM=1024.
    bm = min(_round_up(block_m, 8), _round_up(B, 8))
    Bp = _round_up(B, bm)
    xf = x.astype(jnp.float32)
    xp = jnp.pad(xf, ((0, Bp - B), (0, 0))) if Bp != B else xf
    grid = (Bp // bm,)

    kernel = _make_mlp_kernel(proba, n_classes=C, c_padded=Cp)

    out = pl.pallas_call(
        kernel,
        out_shape=jax.ShapeDtypeStruct((Bp, Cp), jnp.float32),
        grid=grid,
        in_specs=[
            pl.BlockSpec((bm, 2), lambda i: (i, 0)),     # x: tiled over batch
            pl.BlockSpec((2, Fp), lambda i: (0, 0)),     # w0: resident across steps
            pl.BlockSpec((1, Fp), lambda i: (0, 0)),     # b0
            pl.BlockSpec((Fp, Cp), lambda i: (0, 0)),    # w1
            pl.BlockSpec((1, Cp), lambda i: (0, 0)),     # b1
        ],
        out_specs=pl.BlockSpec((bm, Cp), lambda i: (i, 0)),
        compiler_params=pltpu.CompilerParams(
            # Batch-tile steps are independent -> parallel (megacore sharding on v7x).
            dimension_semantics=("parallel",),
        ),
    )(xp, w0p, b0p, w1p, b1p)

    return out[:B, :C]


def _reference(x, w0, b0, w1, b1, proba):
    h = jnp.maximum(x @ w0 + b0.reshape(1, -1), 0.0)
    y = h @ w1 + b1.reshape(1, -1)
    if proba:
        y = jax.nn.softmax(y, axis=1)
    return y


if __name__ == "__main__":
    n_classes = 2
    num_features = 10

    key = jax.random.PRNGKey(0)
    kx, k0, kb0, k1, kb1, kx2 = jax.random.split(key, 6)

    # Deterministic params (PyTorch Linear shapes dense0 (10,2), dense1 (2,10)),
    # stored transposed as [in, out] for the kernel.
    w0 = jax.random.normal(k0, (2, num_features), dtype=jnp.float32) * 0.5
    b0 = jax.random.normal(kb0, (1, num_features), dtype=jnp.float32) * 0.1
    w1 = jax.random.normal(k1, (num_features, n_classes), dtype=jnp.float32) * 0.5
    b1 = jax.random.normal(kb1, (1, n_classes), dtype=jnp.float32) * 0.1

    # Case 1: tiny batch (single grid step).  Case 2: non-multiple batch with a
    # small tile to exercise the multi-step pipelined grid + padding/slicing path.
    cases = [
        (jax.random.normal(kx, (8, 2), dtype=jnp.float32), 1024),
        (jax.random.normal(kx2, (300, 2), dtype=jnp.float32), 128),
    ]

    for x, bmq in cases:
        for proba in (False, True):
            out = toy_module_2d_forward(x, w0, b0, w1, b1, proba=proba, block_m=bmq)
            out = jax.block_until_ready(out)
            ref = _reference(x, w0, b0, w1, b1, proba)
            assert out.shape == (x.shape[0], n_classes)
            assert jnp.allclose(out, ref, atol=1e-5, rtol=1e-5), (
                f"mismatch vs reference (B={x.shape[0]}, proba={proba})"
            )

    print("KERNEL_OK")
</pallas_src>

<mosaic_0001>
module attributes {stable_mosaic.version = 11 : i64} {
  func.func @mlp_kernel(%arg0: i32, %arg1: memref<8x2xf32, #tpu.memory_space<vmem>>, %arg2: memref<2x128xf32, #tpu.memory_space<vmem>>, %arg3: memref<1x128xf32, #tpu.memory_space<vmem>>, %arg4: memref<128x128xf32, #tpu.memory_space<vmem>>, %arg5: memref<1x128xf32, #tpu.memory_space<vmem>>, %arg6: memref<8x128xf32, #tpu.memory_space<vmem>>) attributes {dimension_semantics = [#tpu.dimension_semantics<parallel>], iteration_bounds = array<i64: 1>, scalar_prefetch = 0 : i64, scratch_operands = 0 : i64, tpu.core_type = #tpu.core_type<tc>, window_params = [{transform_indices = @transform_0, window_bounds = array<i64: 8, 2>}, {pipeline_mode = #tpu.pipeline_mode<synchronous>, transform_indices = @transform_1, window_bounds = array<i64: 2, 128>}, {pipeline_mode = #tpu.pipeline_mode<synchronous>, transform_indices = @transform_2, window_bounds = array<i64: 1, 128>}, {pipeline_mode = #tpu.pipeline_mode<synchronous>, transform_indices = @transform_3, window_bounds = array<i64: 128, 128>}, {pipeline_mode = #tpu.pipeline_mode<synchronous>, transform_indices = @transform_4, window_bounds = array<i64: 1, 128>}, {transform_indices = @transform_5, window_bounds = array<i64: 8, 128>}]} {
    %c0 = arith.constant 0 : index
    %c0_0 = arith.constant 0 : index
    %0 = vector.load %arg1[%c0, %c0_0] : memref<8x2xf32, #tpu.memory_space<vmem>>, vector<8x2xf32>
    %c0_1 = arith.constant 0 : index
    %c0_2 = arith.constant 0 : index
    %1 = vector.load %arg2[%c0_1, %c0_2] : memref<2x128xf32, #tpu.memory_space<vmem>>, vector<2x128xf32>
    %2 = vector.extract_strided_slice %0 {offsets = [0, 0], sizes = [8, 1], strides = [1, 1]} : vector<8x2xf32> to vector<8x1xf32>
    %3 = vector.extract_strided_slice %1 {offsets = [0, 0], sizes = [1, 128], strides = [1, 1]} : vector<2x128xf32> to vector<1x128xf32>
    %4 = vector.broadcast %2 : vector<8x1xf32> to vector<8x128xf32>
    %5 = vector.broadcast %3 : vector<1x128xf32> to vector<8x128xf32>
    %6 = arith.mulf %4, %5 : vector<8x128xf32>
    %7 = vector.extract_strided_slice %0 {offsets = [0, 1], sizes = [8, 1], strides = [1, 1]} : vector<8x2xf32> to vector<8x1xf32>
    %8 = vector.extract_strided_slice %1 {offsets = [1, 0], sizes = [1, 128], strides = [1, 1]} : vector<2x128xf32> to vector<1x128xf32>
    %9 = vector.broadcast %7 : vector<8x1xf32> to vector<8x128xf32>
    %10 = vector.broadcast %8 : vector<1x128xf32> to vector<8x128xf32>
    %11 = arith.mulf %9, %10 : vector<8x128xf32>
    %12 = arith.addf %6, %11 : vector<8x128xf32>
    %c0_3 = arith.constant 0 : index
    %c0_4 = arith.constant 0 : index
    %13 = vector.load %arg3[%c0_3, %c0_4] : memref<1x128xf32, #tpu.memory_space<vmem>>, vector<1x128xf32>
    %14 = vector.broadcast %13 : vector<1x128xf32> to vector<8x128xf32>
    %15 = arith.addf %12, %14 : vector<8x128xf32>
    %cst = arith.constant 0.000000e+00 : f32
    %16 = vector.broadcast %cst : f32 to vector<8x128xf32>
    %17 = arith.maximumf %15, %16 : vector<8x128xf32>
    %c0_5 = arith.constant 0 : index
    %c0_6 = arith.constant 0 : index
    %18 = vector.load %arg4[%c0_5, %c0_6] : memref<128x128xf32, #tpu.memory_space<vmem>>, vector<128x128xf32>
    %cst_7 = arith.constant dense<0.000000e+00> : vector<8x128xf32>
    %19 = tpu.matmul %17, %18, %cst_7 {dimension_numbers = #tpu.dot_dimension_numbers<[1], [0], [0], [1], [0, 0, 1, 1], [], []>} : vector<8x128xf32>, vector<128x128xf32>, vector<8x128xf32> -> vector<8x128xf32>
    %c0_8 = arith.constant 0 : index
    %c0_9 = arith.constant 0 : index
    %20 = vector.load %arg5[%c0_8, %c0_9] : memref<1x128xf32, #tpu.memory_space<vmem>>, vector<1x128xf32>
    %21 = vector.broadcast %20 : vector<1x128xf32> to vector<8x128xf32>
    %22 = arith.addf %19, %21 : vector<8x128xf32>
    %c0_10 = arith.constant 0 : index
    %c0_11 = arith.constant 0 : index
    %23 = vector.load %arg6[%c0_10, %c0_11] : memref<8x128xf32, #tpu.memory_space<vmem>>, vector<8x128xf32>
    tpu.vector_store %arg6[%c0_10, %c0_11], %22 {strides = array<i32>} : memref<8x128xf32, #tpu.memory_space<vmem>>, vector<8x128xf32>,
    return
  }
  func.func @transform_0(%arg0: i32) -> (i32, i32) {
    %c0_i32 = arith.constant 0 : i32
    %c0_i32_0 = arith.constant 0 : i32
    return %arg0, %c0_i32 : i32, i32
  }
  func.func @transform_1(%arg0: i32) -> (i32, i32) {
    %c0_i32 = arith.constant 0 : i32
    %c0_i32_0 = arith.constant 0 : i32
    %c0_i32_1 = arith.constant 0 : i32
    return %c0_i32, %c0_i32_0 : i32, i32
  }
  func.func @transform_2(%arg0: i32) -> (i32, i32) {
    %c0_i32 = arith.constant 0 : i32
    %c0_i32_0 = arith.constant 0 : i32
    %c0_i32_1 = arith.constant 0 : i32
    return %c0_i32, %c0_i32_0 : i32, i32
  }
  func.func @transform_3(%arg0: i32) -> (i32, i32) {
    %c0_i32 = arith.constant 0 : i32
    %c0_i32_0 = arith.constant 0 : i32
    %c0_i32_1 = arith.constant 0 : i32
    return %c0_i32, %c0_i32_0 : i32, i32
  }
  func.func @transform_4(%arg0: i32) -> (i32, i32) {
    %c0_i32 = arith.constant 0 : i32
    %c0_i32_0 = arith.constant 0 : i32
    %c0_i32_1 = arith.constant 0 : i32
    return %c0_i32, %c0_i32_0 : i32, i32
  }
  func.func @transform_5(%arg0: i32) -> (i32, i32) {
    %c0_i32 = arith.constant 0 : i32
    %c0_i32_0 = arith.constant 0 : i32
    return %arg0, %c0_i32 : i32, i32
  }
}

</mosaic_0001>

<llo_original>
// kernel: toy_module_2d_forward.1
$region0: #{toy_module_2d_forward.1}
  #allocation0 [shape = 'u32[]', space=smem, size = 0x4, offset = 0x4, fixed_abs, tag = 'smem constant byte address 0x4 - core index']
  #allocation1 [shape = 'u32[72,128]{1,0:T(1,128)}', space=vmem, size = 0x9000, scoped, tag = 'internal scratch']
  %s0 = inlined_call_operand.vmem [shape: f32[8,2], index: 0, kind: input, shape index: {}]
  %s1 = inlined_call_operand.vmem [shape: f32[2,128], index: 1, kind: input, shape index: {}]
  %s2 = inlined_call_operand.vmem [shape: f32[1,128], index: 2, kind: input, shape index: {}]
  %s3 = inlined_call_operand.vmem [shape: f32[128,128], index: 3, kind: input, shape index: {}]
  %s4 = inlined_call_operand.vmem [shape: f32[1,128], index: 4, kind: input, shape index: {}]
  %s5 = inlined_call_operand.vmem [shape: f32[8,128], index: 5, kind: output, shape index: {}]
  %s6 = sld [smem:[#allocation0]]
  $region30: #{toy_module_2d_forward.1} parent=0
    _
  %s8 = ssub.s32 1, %s6
  %s9 = scalar_select 0, %s8, %s6
  // Predicated region
  $region2: #{toy_module_2d_forward.1} parent=0 // pred_check
    _
  $region3: #{toy_module_2d_forward.1} parent=0 // pred_check_branch
    %11 = sbr.rel (0) target = $region5
  $region4: #{toy_module_2d_forward.1} parent=0 // pred_region
    _
  $region5: #{toy_module_2d_forward.1} parent=0 // pred_fallthru
    _
  // Predicated region
  $region6: #{toy_module_2d_forward.1} parent=0 // pred_check
    _
  $region7: #{toy_module_2d_forward.1} parent=0 // pred_check_branch
    %13 = sbr.rel (0) target = $region9
  $region8: #{toy_module_2d_forward.1} parent=0 // pred_region
    _
  $region9: #{toy_module_2d_forward.1} parent=0 // pred_fallthru
    _
  // Predicated region
  $region10: #{toy_module_2d_forward.1} parent=0 // pred_check
    _
  $region11: #{toy_module_2d_forward.1} parent=0 // pred_check_branch
    %15 = sbr.rel (0) target = $region13
  $region12: #{toy_module_2d_forward.1} parent=0 // pred_region
    _
  $region13: #{toy_module_2d_forward.1} parent=0 // pred_fallthru
    _
  // Predicated region
  $region14: #{toy_module_2d_forward.1} parent=0 // pred_check
    _
  $region15: #{toy_module_2d_forward.1} parent=0 // pred_check_branch
    %17 = sbr.rel (0) target = $region17
  $region16: #{toy_module_2d_forward.1} parent=0 // pred_region
    _
  $region17: #{toy_module_2d_forward.1} parent=0 // pred_fallthru
    _
  // Predicated region
  $region18: #{toy_module_2d_forward.1} parent=0 // pred_check
    _
  $region19: #{toy_module_2d_forward.1} parent=0 // pred_check_branch
    %19 = sbr.rel (0) target = $region21
  $region20: #{toy_module_2d_forward.1} parent=0 // pred_region
    _
  $region21: #{toy_module_2d_forward.1} parent=0 // pred_fallthru
    _
  %v20 = vld [vmem:[%s0] sm:$0xff]
  %v21 = vld [vmem:[%s1] sm:$0x3]
  %23 = vset.pattern.permute.xlu0 0
  %24 = vperm.xlu0 %23, %v20
  %v25 = vpop.permute.xlu0 %24
  %v27 = vperm.slane %v21, 0
  %v28 = vmul.f32 %v25, %v27
  %29 = vset.pattern.permute.xlu0 1
  %30 = vperm.xlu0 %29, %v20
  %v31 = vpop.permute.xlu0 %30
  %v33 = vperm.slane %v21, 1
  %v34 = vmul.f32 %v31, %v33
  %v35 = vadd.f32 %v28, %v34
  %v36 = vld [vmem:[%s2] sm:$0x1]
  %v38 = vperm.slane %v36, 0
  %v40 = vadd.f32 %v35, %v38
  %v41 = vmax.f32 %v40, 0.0
  %v42 = vld [vmem:[%s3] sm:$0xff]
  %v43 = vld [vmem:[%s3 + $0x8] sm:$0xff]
  %v44 = vld [vmem:[%s3 + $0x10] sm:$0xff]
  %v45 = vld [vmem:[%s3 + $0x18] sm:$0xff]
  %v46 = vld [vmem:[%s3 + $0x20] sm:$0xff]
  %v47 = vld [vmem:[%s3 + $0x28] sm:$0xff]
  %v48 = vld [vmem:[%s3 + $0x30] sm:$0xff]
  %v49 = vld [vmem:[%s3 + $0x38] sm:$0xff]
  %v50 = vld [vmem:[%s3 + $0x40] sm:$0xff]
  %v51 = vld [vmem:[%s3 + $0x48] sm:$0xff]
  %v52 = vld [vmem:[%s3 + $0x50] sm:$0xff]
  %v53 = vld [vmem:[%s3 + $0x58] sm:$0xff]
  %v54 = vld [vmem:[%s3 + $0x60] sm:$0xff]
  %v55 = vld [vmem:[%s3 + $0x68] sm:$0xff]
  %v56 = vld [vmem:[%s3 + $0x70] sm:$0xff]
  %v57 = vld [vmem:[%s3 + $0x78] sm:$0xff]
  %v58 = vld [vmem:[%s4] sm:$0x1]
  %v60 = vperm.slane %v58, 0
  %62 = vmatpush.msra.mxu0 %v57
  %63 = vmatpush.msra.mxu0 %v56
  %64 = vmatpush.msra.mxu0 %v55
  %65 = vmatpush.msra.mxu0 %v54
  %66 = vmatpush.msra.mxu0 %v53
  %67 = vmatpush.msra.mxu0 %v52
  %68 = vmatpush.msra.mxu0 %v51
  %69 = vmatpush.msra.mxu0 %v50
  %70 = vmatpush.msra.mxu0 %v49
  %71 = vmatpush.msra.mxu0 %v48
  %72 = vmatpush.msra.mxu0 %v47
  %73 = vmatpush.msra.mxu0 %v46
  %74 = vmatpush.msra.mxu0 %v45
  %75 = vmatpush.msra.mxu0 %v44
  %76 = vmatpush.msra.mxu0 %v43
  %77 = vmatpush.msra.mxu0 %v42
  %78 = vmatmul.f32.gmra.mxu0 %v41
  %v79 = vpop.f32.mrf.mxu0
  %v80 = vadd.f32 %v60, %v79
  %81 = vdwg.mxu0
  %82 = vst [vmem:[%s5] sm:$0xff] %v80
  // Predicated region
  $region22: #{toy_module_2d_forward.1} parent=0 // pred_check
    _
  $region23: #{toy_module_2d_forward.1} parent=0 // pred_check_branch
    %84 = sbr.rel (0) target = $region25
  $region24: #{toy_module_2d_forward.1} parent=0 // pred_region
    _
  $region25: #{toy_module_2d_forward.1} parent=0 // pred_fallthru
    _
  // Predicated region
  $region26: #{toy_module_2d_forward.1} parent=0 // pred_check
    _
  $region27: #{toy_module_2d_forward.1} parent=0 // pred_check_branch
    %86 = sbr.rel (0) target = $region29
  $region28: #{toy_module_2d_forward.1} parent=0 // pred_region
    _
  $region29: #{toy_module_2d_forward.1} parent=0 // pred_fallthru
    _

</llo_original>
